<compile_context>
chip_gen: v7x
topology: tpu7x:2x2x1
jax: 0.10.0
libtpu: 0.0.40
codegen_flags: <defaults>
</compile_context>

<pallas_src>
import jax
import jax.numpy as jnp
from jax.experimental import pallas as pl
from jax.experimental.pallas import tpu as pltpu


def _round_up(n, m):
    return ((n + m - 1) // m) * m


def encoder_vae_kernel(x_ref, w1_ref, b1_ref, w2_ref, b2_ref, eps_ref, out_ref):
    zp = eps_ref.shape[-1]  # padded latent width (multiple of 128)

    # fc1 + ReLU: in-kernel bf16 cast of x (VPU, free under MXU), bf16 MXU
    # matmul, f32 accumulate / epilogue.
    xb = x_ref[...].astype(w1_ref.dtype)
    h = jnp.dot(xb, w1_ref[...], preferred_element_type=jnp.float32)
    h = jnp.maximum(h + b1_ref[...], 0.0)

    # m_z: single fused matmul producing [mu | logvar], each Zp lanes wide.
    d = jnp.dot(h.astype(w2_ref.dtype), w2_ref[...],
                preferred_element_type=jnp.float32) + b2_ref[...]
    mu = d[:, :zp]            # 128-aligned slice, no cross-lane shuffle
    logvar = d[:, zp:]

    # reparametrize: mu + exp(logvar / 2) * eps
    emb = mu + jnp.exp(logvar * 0.5) * eps_ref[...]

    # Lane-dense output slab [emb | mu | logvar]; every store starts on a
    # 128-lane boundary and [mu|logvar] goes out as one wide store.
    out_ref[:, 0:zp] = emb.astype(out_ref.dtype)
    out_ref[:, zp:3 * zp] = d.astype(out_ref.dtype)


def encoder_vae_forward(x, w1, b1, w2, b2, eps, *, block_b=512,
                        compute_dtype=jnp.bfloat16, out_dtype=jnp.float32):
    """EncoderVAE forward.

    x:   (B, D_in) f32;  w1: (D_in, H) f32 (transposed, in x out);  b1: (1, H)
    w2:  (H, 2*Z)  f32 (transposed; [:, :Z]=mu, [:, Z:]=logvar);    b2: (1, 2*Z)
    eps: (B, Z)    f32 standard-normal noise
    Returns (embedding, mu, logvar), each (B, Z) float32.
    """
    B, d_in = x.shape
    H = w1.shape[1]
    Z = eps.shape[1]
    assert w1.shape == (d_in, H) and b1.shape == (1, H)
    assert w2.shape == (H, 2 * Z) and b2.shape == (1, 2 * Z)
    assert eps.shape == (B, Z)

    Zp = _round_up(Z, 128)     # lane-aligned latent width
    Hp = _round_up(H, 128)     # lane-aligned hidden width

    # Batch tile: multiple of 16 (bf16 sublane packing), capped so the grid
    # has >= 2 steps whenever the batch allows (keeps both v7x TCs busy).
    Bup = _round_up(B, 16)
    TB = min(_round_up(block_b, 16), Bup)
    if TB >= Bup and Bup >= 32:
        TB = _round_up(pl.cdiv(Bup, 2), 16)
    Bp = _round_up(B, TB)
    grid = (Bp // TB,)

    # --- wrapper-side layout plumbing (zero-padding only; x is NOT copied
    #     or cast here — the bf16 cast happens inside the kernel) ---
    xp = x if Bp == B else jnp.pad(x, ((0, Bp - B), (0, 0)))
    epsp = jnp.pad(eps, ((0, Bp - B), (0, Zp - Z)))
    w1c = jnp.pad(w1, ((0, 0), (0, Hp - H))).astype(compute_dtype)
    b1c = jnp.pad(b1, ((0, 0), (0, Hp - H)))
    # m_z fused and lane-aligned: lanes [:Zp] = mu head, [Zp:] = logvar head.
    w2c = jnp.concatenate(
        [jnp.pad(w2[:, :Z], ((0, Hp - H), (0, Zp - Z))),
         jnp.pad(w2[:, Z:], ((0, Hp - H), (0, Zp - Z)))],
        axis=1).astype(compute_dtype)
    b2c = jnp.concatenate(
        [jnp.pad(b2[:, :Z], ((0, 0), (0, Zp - Z))),
         jnp.pad(b2[:, Z:], ((0, 0), (0, Zp - Z)))],
        axis=1)

    nbytes = lambda a: a.size * a.dtype.itemsize
    out_itemsize = jnp.dtype(out_dtype).itemsize

    # Explicit VMEM budget: pinned weights once (single-buffered) +
    # 2x streamed (x, eps, out) tiles + per-step f32/bf16 temporaries, +25%.
    pinned_bytes = nbytes(w1c) + nbytes(b1c) + nbytes(w2c) + nbytes(b2c)
    stream_tile_bytes = (TB * d_in * x.dtype.itemsize
                         + TB * Zp * 4
                         + TB * 3 * Zp * out_itemsize)
    temp_bytes = TB * Hp * (4 + 2) + TB * 2 * Zp * 4
    vmem_limit = int(1.25 * (pinned_bytes + 2 * stream_tile_bytes + temp_bytes))
    vmem_limit = min(max(vmem_limit, 16 << 20), 100 << 20)

    def row_spec(width):                   # tiled over the batch grid axis
        return pl.BlockSpec((TB, width), lambda i: (i, 0))

    def pinned(shape):                     # VMEM-resident, single-buffered
        try:
            return pl.BlockSpec(shape, lambda i: (0, 0),
                                pipeline_mode=pl.Buffered(1))
        except TypeError:                  # older jax: no pipeline_mode kwarg
            return pl.BlockSpec(shape, lambda i: (0, 0))

    cost = pl.CostEstimate(
        flops=2 * Bp * (d_in * Hp + Hp * 2 * Zp),
        transcendentals=Bp * Zp,
        bytes_accessed=int(nbytes(xp) + nbytes(epsp) + pinned_bytes
                           + Bp * 3 * Zp * out_itemsize),
    )

    out = pl.pallas_call(
        encoder_vae_kernel,
        out_shape=jax.ShapeDtypeStruct((Bp, 3 * Zp), out_dtype),
        grid=grid,
        in_specs=[
            row_spec(d_in),          # x (native f32; cast in-kernel)
            pinned((d_in, Hp)),      # w1
            pinned((1, Hp)),         # b1
            pinned((Hp, 2 * Zp)),    # w2 fused [mu | logvar]
            pinned((1, 2 * Zp)),     # b2 fused
            row_spec(Zp),            # eps
        ],
        out_specs=row_spec(3 * Zp),
        compiler_params=pltpu.CompilerParams(
            dimension_semantics=("parallel",),
            vmem_limit_bytes=vmem_limit,
        ),
        cost_estimate=cost,
    )(xp, w1c, b1c, w2c, b2c, epsp)

    embedding = out[:B, 0:Z].astype(jnp.float32)
    mu = out[:B, Zp:Zp + Z].astype(jnp.float32)
    logvar = out[:B, 2 * Zp:2 * Zp + Z].astype(jnp.float32)
    return embedding, mu, logvar


if __name__ == "__main__":
    # Small shapes consistent with the module: Linear(input_dim, hidden_dim),
    # Linear(hidden_dim, 2*output_dim).
    batch = 32
    input_dim = 16
    hidden_dim = 32
    output_dim = 8

    key = jax.random.PRNGKey(0)
    kx, keps, kw1, kb1, kw2, kb2 = jax.random.split(key, 6)

    x = jax.random.normal(kx, (batch, input_dim), dtype=jnp.float32)
    eps = jax.random.normal(keps, (batch, output_dim), dtype=jnp.float32)

    # Deterministic synthetic parameters (mimics nn.Linear uniform init scale),
    # stored pre-transposed as (in_features, out_features).
    lim1 = 1.0 / jnp.sqrt(input_dim)
    lim2 = 1.0 / jnp.sqrt(hidden_dim)
    w1 = jax.random.uniform(kw1, (input_dim, hidden_dim), jnp.float32, -lim1, lim1)
    b1 = jax.random.uniform(kb1, (1, hidden_dim), jnp.float32, -lim1, lim1)
    w2 = jax.random.uniform(kw2, (hidden_dim, 2 * output_dim), jnp.float32, -lim2, lim2)
    b2 = jax.random.uniform(kb2, (1, 2 * output_dim), jnp.float32, -lim2, lim2)

    # Default block_b caps TB at Bup/2 here -> TB=16, grid=(2,), which still
    # exercises a multi-step batch grid (and both TCs on v7x).
    embedding, mu, logvar = encoder_vae_forward(x, w1, b1, w2, b2, eps)
    jax.block_until_ready((embedding, mu, logvar))

    # Reference 1: identical bf16-on-MXU / f32-accumulate path in plain JAX.
    xb = x.astype(jnp.bfloat16)
    h = jnp.maximum(jnp.dot(xb, w1.astype(jnp.bfloat16),
                            preferred_element_type=jnp.float32) + b1, 0.0)
    hb = h.astype(jnp.bfloat16)
    mu_ref = jnp.dot(hb, w2[:, :output_dim].astype(jnp.bfloat16),
                     preferred_element_type=jnp.float32) + b2[:, :output_dim]
    lv_ref = jnp.dot(hb, w2[:, output_dim:].astype(jnp.bfloat16),
                     preferred_element_type=jnp.float32) + b2[:, output_dim:]
    emb_ref = mu_ref + jnp.exp(lv_ref * 0.5) * eps

    assert jnp.allclose(mu, mu_ref, atol=2e-3), float(jnp.max(jnp.abs(mu - mu_ref)))
    assert jnp.allclose(logvar, lv_ref, atol=2e-3), float(jnp.max(jnp.abs(logvar - lv_ref)))
    assert jnp.allclose(embedding, emb_ref, atol=2e-3), float(jnp.max(jnp.abs(embedding - emb_ref)))

    # Reference 2: full-f32 math (loose tolerance vs. the bf16 matmul inputs).
    h32 = jnp.maximum(x @ w1 + b1, 0.0)
    d32 = h32 @ w2 + b2
    mu32 = d32[:, :output_dim]
    lv32 = d32[:, output_dim:]
    emb32 = mu32 + jnp.exp(lv32 * 0.5) * eps
    assert jnp.allclose(mu, mu32, atol=1e-1)
    assert jnp.allclose(logvar, lv32, atol=1e-1)
    assert jnp.allclose(embedding, emb32, atol=1e-1)

    print("KERNEL_OK")
</pallas_src>

<mosaic_0001>
module attributes {stable_mosaic.version = 11 : i64} {
  func.func @encoder_vae_kernel(%arg0: i32, %arg1: memref<16x16xf32, #tpu.memory_space<vmem>>, %arg2: memref<16x128xbf16, #tpu.memory_space<vmem>>, %arg3: memref<1x128xf32, #tpu.memory_space<vmem>>, %arg4: memref<128x256xbf16, #tpu.memory_space<vmem>>, %arg5: memref<1x256xf32, #tpu.memory_space<vmem>>, %arg6: memref<16x128xf32, #tpu.memory_space<vmem>>, %arg7: memref<16x384xf32, #tpu.memory_space<vmem>>) attributes {dimension_semantics = [#tpu.dimension_semantics<parallel>], iteration_bounds = array<i64: 2>, scalar_prefetch = 0 : i64, scratch_operands = 0 : i64, tpu.core_type = #tpu.core_type<tc>, window_params = [{transform_indices = @transform_0, window_bounds = array<i64: 16, 16>}, {pipeline_mode = #tpu.pipeline_mode<synchronous>, transform_indices = @transform_1, window_bounds = array<i64: 16, 128>}, {pipeline_mode = #tpu.pipeline_mode<synchronous>, transform_indices = @transform_2, window_bounds = array<i64: 1, 128>}, {pipeline_mode = #tpu.pipeline_mode<synchronous>, transform_indices = @transform_3, window_bounds = array<i64: 128, 256>}, {pipeline_mode = #tpu.pipeline_mode<synchronous>, transform_indices = @transform_4, window_bounds = array<i64: 1, 256>}, {transform_indices = @transform_5, window_bounds = array<i64: 16, 128>}, {transform_indices = @transform_6, window_bounds = array<i64: 16, 384>}]} {
    %c0 = arith.constant 0 : index
    %c0_0 = arith.constant 0 : index
    %0 = vector.load %arg1[%c0, %c0_0] : memref<16x16xf32, #tpu.memory_space<vmem>>, vector<16x16xf32>
    %1 = arith.truncf %0 : vector<16x16xf32> to vector<16x16xbf16>
    %c0_1 = arith.constant 0 : index
    %c0_2 = arith.constant 0 : index
    %2 = vector.load %arg2[%c0_1, %c0_2] : memref<16x128xbf16, #tpu.memory_space<vmem>>, vector<16x128xbf16>
    %cst = arith.constant dense<0.000000e+00> : vector<16x128xf32>
    %3 = tpu.matmul %1, %2, %cst {dimension_numbers = #tpu.dot_dimension_numbers<[1], [0], [0], [1], [0, 0, 1, 1], [], []>} : vector<16x16xbf16>, vector<16x128xbf16>, vector<16x128xf32> -> vector<16x128xf32>
    %c0_3 = arith.constant 0 : index
    %c0_4 = arith.constant 0 : index
    %4 = vector.load %arg3[%c0_3, %c0_4] : memref<1x128xf32, #tpu.memory_space<vmem>>, vector<1x128xf32>
    %5 = vector.broadcast %4 : vector<1x128xf32> to vector<16x128xf32>
    %6 = arith.addf %3, %5 : vector<16x128xf32>
    %cst_5 = arith.constant 0.000000e+00 : f32
    %7 = vector.broadcast %cst_5 : f32 to vector<16x128xf32>
    %8 = arith.maximumf %6, %7 : vector<16x128xf32>
    %9 = arith.truncf %8 : vector<16x128xf32> to vector<16x128xbf16>
    %c0_6 = arith.constant 0 : index
    %c0_7 = arith.constant 0 : index
    %10 = vector.load %arg4[%c0_6, %c0_7] : memref<128x256xbf16, #tpu.memory_space<vmem>>, vector<128x256xbf16>
    %cst_8 = arith.constant dense<0.000000e+00> : vector<16x256xf32>
    %11 = tpu.matmul %9, %10, %cst_8 {dimension_numbers = #tpu.dot_dimension_numbers<[1], [0], [0], [1], [0, 0, 1, 1], [], []>} : vector<16x128xbf16>, vector<128x256xbf16>, vector<16x256xf32> -> vector<16x256xf32>
    %c0_9 = arith.constant 0 : index
    %c0_10 = arith.constant 0 : index
    %12 = vector.load %arg5[%c0_9, %c0_10] : memref<1x256xf32, #tpu.memory_space<vmem>>, vector<1x256xf32>
    %13 = vector.broadcast %12 : vector<1x256xf32> to vector<16x256xf32>
    %14 = arith.addf %11, %13 : vector<16x256xf32>
    %15 = vector.extract_strided_slice %14 {offsets = [0, 0], sizes = [16, 128], strides = [1, 1]} : vector<16x256xf32> to vector<16x128xf32>
    %16 = vector.extract_strided_slice %14 {offsets = [0, 128], sizes = [16, 128], strides = [1, 1]} : vector<16x256xf32> to vector<16x128xf32>
    %cst_11 = arith.constant 5.000000e-01 : f32
    %17 = vector.broadcast %cst_11 : f32 to vector<16x128xf32>
    %18 = arith.mulf %16, %17 : vector<16x128xf32>
    %19 = math.exp %18 : vector<16x128xf32>
    %c0_12 = arith.constant 0 : index
    %c0_13 = arith.constant 0 : index
    %20 = vector.load %arg6[%c0_12, %c0_13] : memref<16x128xf32, #tpu.memory_space<vmem>>, vector<16x128xf32>
    %21 = arith.mulf %19, %20 : vector<16x128xf32>
    %22 = arith.addf %15, %21 : vector<16x128xf32>
    %c0_14 = arith.constant 0 : index
    %c0_15 = arith.constant 0 : index
    %23 = vector.load %arg7[%c0_14, %c0_15] : memref<16x384xf32, #tpu.memory_space<vmem>>, vector<16x128xf32>
    tpu.vector_store %arg7[%c0_14, %c0_15], %22 {strides = array<i32>} : memref<16x384xf32, #tpu.memory_space<vmem>>, vector<16x128xf32>,
    %c0_16 = arith.constant 0 : index
    %c128 = arith.constant 128 : index
    %24 = vector.load %arg7[%c0_16, %c128] : memref<16x384xf32, #tpu.memory_space<vmem>>, vector<16x256xf32>
    tpu.vector_store %arg7[%c0_16, %c128], %14 {strides = array<i32>} : memref<16x384xf32, #tpu.memory_space<vmem>>, vector<16x256xf32>,
    return
  }
  func.func @transform_0(%arg0: i32) -> (i32, i32) {
    %c0_i32 = arith.constant 0 : i32
    %c0_i32_0 = arith.constant 0 : i32
    return %arg0, %c0_i32 : i32, i32
  }
  func.func @transform_1(%arg0: i32) -> (i32, i32) {
    %c0_i32 = arith.constant 0 : i32
    %c0_i32_0 = arith.constant 0 : i32
    %c0_i32_1 = arith.constant 0 : i32
    return %c0_i32, %c0_i32_0 : i32, i32
  }
  func.func @transform_2(%arg0: i32) -> (i32, i32) {
    %c0_i32 = arith.constant 0 : i32
    %c0_i32_0 = arith.constant 0 : i32
    %c0_i32_1 = arith.constant 0 : i32
    return %c0_i32, %c0_i32_0 : i32, i32
  }
  func.func @transform_3(%arg0: i32) -> (i32, i32) {
    %c0_i32 = arith.constant 0 : i32
    %c0_i32_0 = arith.constant 0 : i32
    %c0_i32_1 = arith.constant 0 : i32
    return %c0_i32, %c0_i32_0 : i32, i32
  }
  func.func @transform_4(%arg0: i32) -> (i32, i32) {
    %c0_i32 = arith.constant 0 : i32
    %c0_i32_0 = arith.constant 0 : i32
    %c0_i32_1 = arith.constant 0 : i32
    return %c0_i32, %c0_i32_0 : i32, i32
  }
  func.func @transform_5(%arg0: i32) -> (i32, i32) {
    %c0_i32 = arith.constant 0 : i32
    %c0_i32_0 = arith.constant 0 : i32
    return %arg0, %c0_i32 : i32, i32
  }
  func.func @transform_6(%arg0: i32) -> (i32, i32) {
    %c0_i32 = arith.constant 0 : i32
    %c0_i32_0 = arith.constant 0 : i32
    return %arg0, %c0_i32 : i32, i32
  }
}

</mosaic_0001>

<llo_original>
// kernel: tpu_custom_call.1
$region0: #{tpu_custom_call.1}
  #allocation0 [shape = 'u32[]', space=smem, size = 0x4, offset = 0x4, fixed_abs, tag = 'smem constant byte address 0x4 - core index']
  #allocation1 [shape = 'u32[144,128]{1,0:T(1,128)}', space=vmem, size = 0x12000, scoped, tag = 'internal scratch']
  %s0 = inlined_call_operand.vmem [shape: f32[32,16], index: 0, kind: input, shape index: {}]
  %s1 = inlined_call_operand.vmem [shape: bf16[16,128], index: 1, kind: input, shape index: {}]
  %s2 = inlined_call_operand.vmem [shape: f32[1,128], index: 2, kind: input, shape index: {}]
  %s3 = inlined_call_operand.hbm [shape: bf16[128,256], index: 3, kind: input, shape index: {}]
  %s4 = inlined_call_operand.vmem [shape: f32[1,256], index: 4, kind: input, shape index: {}]
  %s5 = inlined_call_operand.vmem [shape: f32[32,128], index: 5, kind: input, shape index: {}]
  %s6 = inlined_call_operand.hbm [shape: f32[32,384], index: 6, kind: output, shape index: {}]
  %s7 = sld [smem:[#allocation0]]
  $region61: #{tpu_custom_call.1} parent=0
    _
  %s9 = ssub.s32 1, %s7
  %s10 = scalar_select 0, %s9, %s7
  $region1: #{tpu_custom_call.1} parent=0
    #allocation2 [shape = 'u8[65536]{0}', space=vmem, size = 0x10000, scoped, tag = 'input window, operand 3, single buffered']
    #allocation3 [shape = 's32[2]{0}', space=sflag, size = 0x8, scoped, tag = 'scoped memory for tpu_custom_call.1']
    #allocation4 [shape = 's32[2]{0}', space=sflag, size = 0x8, scoped, tag = 'scoped memory for tpu_custom_call.1']
    #allocation5 [shape = 'u8[49152]{0}', space=vmem, size = 0xc000, scoped, tag = 'output window, operand 0']
    %11 = vsyncpa [#allocation3], 0
    %12 = vsyncpa [#allocation4], 0
    %s13 = scalar_lea.sflag [#allocation4], 1
    %14 = vsyncpa %s13, 0
    loop: start=0, step=1, limit=4
    $region2: #{tpu_custom_call.1} parent=1 // loop_pre_header
      _
    $region3: #{tpu_custom_call.1} parent=1 // loop_header
      %s16 = sphi 0, %s20
      %p17 = scmp.ge.s32.totalorder %s16, 4
      %s26 = sphi 0, %s28
      %s29 = sphi 0, %s26
      %s30 = sphi 0, %s29
      %s46 = sphi 0, %s30
      %s50 = sphi 0, %s50
      %s52 = sphi 0, %s50
      %s53 = sphi 0, %s52
      %s67 = sphi 0, %s53
      %s71 = sphi 0, %s71
      %s73 = sphi 0, %s71
      %s74 = sphi 0, %s73
      %s88 = sphi 0, %s74
      %s92 = sphi 0, %s92
      %s94 = sphi 0, %s92
      %s95 = sphi 0, %s94
      %s109 = sphi 0, %s95
      %s113 = sphi 0, %s113
      %s115 = sphi 0, %s113
      %s116 = sphi 0, %s115
      %s130 = sphi 0, %s116
      %s136 = sphi 0, %s138
      %s139 = sphi 0, %s136
      %s140 = sphi 0, %s139
      %s156 = sphi 0, %s140
      %s162 = sphi 0, %s164
      %s165 = sphi 0, %s162
      %s166 = sphi 0, %s165
      %s182 = sphi 0, %s166
    $region4: #{tpu_custom_call.1} parent=1 // loop_header_branch
      %19 = sbr.rel (%p17) target = $region8
    $region5: #{tpu_custom_call.1} parent=1 // loop_body
      %s21 = ssub.s32 %s16, 1
      %s22 = ssub.s32 %s16, 2
      %s23 = sadd.s32 %s16, 1
      %s24 = ssub.s32 %s16, %s23
      %p25 = scmp.eq.s32.totalorder %s24, 0
      %s27 = sadd.s32 %s26, 1
      %s28 = scalar_select %p25, %s26, %s27
      %p31 = pneg %p25
      %p32 = scmp.eq.s32.totalorder %s16, 1
      %p33 = por %p31, %p32
      %p34 = scmp.ne.s32.totalorder %s26, %s29
      %p35 = scmp.eq.s32.totalorder %s16, 0
      %p36 = por %p34, %p35
      %p37 = scmp.ne.s32.totalorder %s26, %s29
      %p38 = scmp.eq.s32.totalorder %s21, 1
      %p39 = por %p37, %p38
      %p40 = scmp.ne.s32.totalorder %s29, %s30
      %p41 = scmp.eq.s32.totalorder %s21, 0
      %p42 = por %p40, %p41
      %p43 = scmp.ne.s32.totalorder %s29, %s30
      %p44 = scmp.eq.s32.totalorder %s22, 1
      %p45 = por %p43, %p44
      %p47 = scmp.ne.s32.totalorder %s30, %s46
      %p48 = scmp.eq.s32.totalorder %s22, 0
      %p49 = por %p47, %p48
      %s51 = sadd.s32 %s50, 1
      %p54 = scmp.eq.s32.totalorder %s16, 1
      %p55 = scmp.ne.s32.totalorder %s50, %s52
      %p56 = scmp.eq.s32.totalorder %s16, 0
      %p57 = por %p55, %p56
      %p58 = scmp.ne.s32.totalorder %s50, %s52
      %p59 = scmp.eq.s32.totalorder %s21, 1
      %p60 = por %p58, %p59
      %p61 = scmp.ne.s32.totalorder %s52, %s53
      %p62 = scmp.eq.s32.totalorder %s21, 0
      %p63 = por %p61, %p62
      %p64 = scmp.ne.s32.totalorder %s52, %s53
      %p65 = scmp.eq.s32.totalorder %s22, 1
      %p66 = por %p64, %p65
      %p68 = scmp.ne.s32.totalorder %s53, %s67
      %p69 = scmp.eq.s32.totalorder %s22, 0
      %p70 = por %p68, %p69
      %s72 = sadd.s32 %s71, 1
      %p75 = scmp.eq.s32.totalorder %s16, 1
      %p76 = scmp.ne.s32.totalorder %s71, %s73
      %p77 = scmp.eq.s32.totalorder %s16, 0
      %p78 = por %p76, %p77
      %p79 = scmp.ne.s32.totalorder %s71, %s73
      %p80 = scmp.eq.s32.totalorder %s21, 1
      %p81 = por %p79, %p80
      %p82 = scmp.ne.s32.totalorder %s73, %s74
      %p83 = scmp.eq.s32.totalorder %s21, 0
      %p84 = por %p82, %p83
      %p85 = scmp.ne.s32.totalorder %s73, %s74
      %p86 = scmp.eq.s32.totalorder %s22, 1
      %p87 = por %p85, %p86
      %p89 = scmp.ne.s32.totalorder %s74, %s88
      %p90 = scmp.eq.s32.totalorder %s22, 0
      %p91 = por %p89, %p90
      %s93 = sadd.s32 %s92, 1
      %p96 = scmp.eq.s32.totalorder %s16, 1
      %p97 = scmp.ne.s32.totalorder %s92, %s94
      %p98 = scmp.eq.s32.totalorder %s16, 0
      %p99 = por %p97, %p98
      %p100 = scmp.ne.s32.totalorder %s92, %s94
      %p101 = scmp.eq.s32.totalorder %s21, 1
      %p102 = por %p100, %p101
      %p103 = scmp.ne.s32.totalorder %s94, %s95
      %p104 = scmp.eq.s32.totalorder %s21, 0
      %p105 = por %p103, %p104
      %p106 = scmp.ne.s32.totalorder %s94, %s95
      %p107 = scmp.eq.s32.totalorder %s22, 1
      %p108 = por %p106, %p107
      %p110 = scmp.ne.s32.totalorder %s95, %s109
      %p111 = scmp.eq.s32.totalorder %s22, 0
      %p112 = por %p110, %p111
      %s114 = sadd.s32 %s113, 1
      %p117 = scmp.eq.s32.totalorder %s16, 1
      %p118 = scmp.ne.s32.totalorder %s113, %s115
      %p119 = scmp.eq.s32.totalorder %s16, 0
      %p120 = por %p118, %p119
      %p121 = scmp.ne.s32.totalorder %s113, %s115
      %p122 = scmp.eq.s32.totalorder %s21, 1
      %p123 = por %p121, %p122
      %p124 = scmp.ne.s32.totalorder %s115, %s116
      %p125 = scmp.eq.s32.totalorder %s21, 0
      %p126 = por %p124, %p125
      %p127 = scmp.ne.s32.totalorder %s115, %s116
      %p128 = scmp.eq.s32.totalorder %s22, 1
      %p129 = por %p127, %p128
      %p131 = scmp.ne.s32.totalorder %s116, %s130
      %p132 = scmp.eq.s32.totalorder %s22, 0
      %p133 = por %p131, %p132
      %s134 = ssub.s32 %s16, %s23
      %p135 = scmp.eq.s32.totalorder %s134, 0
      %s137 = sadd.s32 %s136, 1
      %s138 = scalar_select %p135, %s136, %s137
      %p141 = pneg %p135
      %p142 = scmp.eq.s32.totalorder %s16, 1
      %p143 = por %p141, %p142
      %p144 = scmp.ne.s32.totalorder %s136, %s139
      %p145 = scmp.eq.s32.totalorder %s16, 0
      %p146 = por %p144, %p145
      %p147 = scmp.ne.s32.totalorder %s136, %s139
      %p148 = scmp.eq.s32.totalorder %s21, 1
      %p149 = por %p147, %p148
      %p150 = scmp.ne.s32.totalorder %s139, %s140
      %p151 = scmp.eq.s32.totalorder %s21, 0
      %p152 = por %p150, %p151
      %p153 = scmp.ne.s32.totalorder %s139, %s140
      %p154 = scmp.eq.s32.totalorder %s22, 1
      %p155 = por %p153, %p154
      %p157 = scmp.ne.s32.totalorder %s140, %s156
      %p158 = scmp.eq.s32.totalorder %s22, 0
      %p159 = por %p157, %p158
      %s160 = ssub.s32 %s16, %s23
      %p161 = scmp.eq.s32.totalorder %s160, 0
      %s163 = sadd.s32 %s162, 1
      %s164 = scalar_select %p161, %s162, %s163
      %p167 = pneg %p161
      %p168 = scmp.eq.s32.totalorder %s16, 1
      %p169 = por %p167, %p168
      %p170 = scmp.ne.s32.totalorder %s162, %s165
      %p171 = scmp.eq.s32.totalorder %s16, 0
      %p172 = por %p170, %p171
      %p173 = scmp.ne.s32.totalorder %s162, %s165
      %p174 = scmp.eq.s32.totalorder %s21, 1
      %p175 = por %p173, %p174
      %p176 = scmp.ne.s32.totalorder %s165, %s166
      %p177 = scmp.eq.s32.totalorder %s21, 0
      %p178 = por %p176, %p177
      %p179 = scmp.ne.s32.totalorder %s165, %s166
      %p180 = scmp.eq.s32.totalorder %s22, 1
      %p181 = por %p179, %p180
      %p183 = scmp.ne.s32.totalorder %s166, %s182
      %p184 = scmp.eq.s32.totalorder %s22, 0
      %p185 = por %p183, %p184
      %p186 = scmp.le.s32.totalorder 1, %s16
      %p187 = scmp.lt.s32.totalorder %s16, 3
      %p188 = pnand %p186, %p187
      %p189 = pneg %p188
      // Predicated region
      $region9: #{tpu_custom_call.1} parent=5 // pred_check
        _
      $region10: #{tpu_custom_call.1} parent=5 // pred_check_branch
        %191 = sbr.rel (%p188) target = $region12
      $region11: #{tpu_custom_call.1} parent=5 // pred_region
        %s192 = ssub.s32 %s16, 1
        // Predicated region
        $region13: #{tpu_custom_call.1} parent=11 // pred_check
          %p193 = pneg %p63
        $region14: #{tpu_custom_call.1} parent=11 // pred_check_branch
          %195 = sbr.rel (%p193) target = $region16
        $region15: #{tpu_custom_call.1} parent=11 // pred_region
          _
        $region16: #{tpu_custom_call.1} parent=11 // pred_fallthru
          _
        // Predicated region
        $region17: #{tpu_custom_call.1} parent=11 // pred_check
          %p196 = pneg %p84
        $region18: #{tpu_custom_call.1} parent=11 // pred_check_branch
          %198 = sbr.rel (%p196) target = $region20
        $region19: #{tpu_custom_call.1} parent=11 // pred_region
          _
        $region20: #{tpu_custom_call.1} parent=11 // pred_fallthru
          _
        // Predicated region
        $region21: #{tpu_custom_call.1} parent=11 // pred_check
          %p199 = pneg %p105
        $region22: #{tpu_custom_call.1} parent=11 // pred_check_branch
          %201 = sbr.rel (%p199) target = $region24
        $region23: #{tpu_custom_call.1} parent=11 // pred_region
          %s203 = ssub.s32 2048, 2048
          %204 = vsyncadd [#allocation3], %s203
          %s205 = sshll.u32 [#allocation2], 4
          %s206 = int_to_ptr.vmem [resolvable:$true] %s205
          %211 = dma.hbm_to_vmem [thread:$0]  %s3, 2048, %s206, [#allocation3], 128, 128, 8
        $region24: #{tpu_custom_call.1} parent=11 // pred_fallthru
          _
        // Predicated region
        $region25: #{tpu_custom_call.1} parent=11 // pred_check
          %p212 = pneg %p126
        $region26: #{tpu_custom_call.1} parent=11 // pred_check_branch
          %214 = sbr.rel (%p212) target = $region28
        $region27: #{tpu_custom_call.1} parent=11 // pred_region
          _
        $region28: #{tpu_custom_call.1} parent=11 // pred_fallthru
          _
      $region12: #{tpu_custom_call.1} parent=5 // pred_fallthru
        _
      %p215 = scmp.lt.s32.totalorder %s16, 2
      // Predicated region
      $region29: #{tpu_custom_call.1} parent=5 // pred_check
        %p216 = pneg %p215
      $region30: #{tpu_custom_call.1} parent=5 // pred_check_branch
        %218 = sbr.rel (%p216) target = $region32
      $region31: #{tpu_custom_call.1} parent=5 // pred_region
        // Predicated region
        $region33: #{tpu_custom_call.1} parent=31 // pred_check
          %p219 = pneg %p36
        $region34: #{tpu_custom_call.1} parent=31 // pred_check_branch
          %221 = sbr.rel (%p219) target = $region36
        $region35: #{tpu_custom_call.1} parent=31 // pred_region
          %s222 = smul.u32 2, %s16
          %p223 = scmp.lt.s32.totalorder %s222, 3
          %s224 = scalar_select %p223, %s222, 3
          %s225 = smul.addr %s224, 8
          %s226 = scalar_lea.vmem %s0, %s225
          %s227 = smul.u32 2, %s16
        $region36: #{tpu_custom_call.1} parent=31 // pred_fallthru
          _
        // Predicated region
        $region37: #{tpu_custom_call.1} parent=31 // pred_check
          %p228 = pneg %p146
        $region38: #{tpu_custom_call.1} parent=31 // pred_check_branch
          %230 = sbr.rel (%p228) target = $region40
        $region39: #{tpu_custom_call.1} parent=31 // pred_region
          %s231 = smul.u32 2, %s16
          %p232 = scmp.lt.s32.totalorder %s231, 3
          %s233 = scalar_select %p232, %s231, 3
          %s234 = smul.addr %s233, 8
          %s235 = scalar_lea.vmem %s5, %s234
          %s236 = smul.u32 2, %s16
        $region40: #{tpu_custom_call.1} parent=31 // pred_fallthru
          _
      $region32: #{tpu_custom_call.1} parent=5 // pred_fallthru
        _
      %p237 = scmp.le.s32.totalorder 1, %s16
      %p238 = scmp.lt.s32.totalorder %s16, 3
      %p239 = pnand %p237, %p238
      %p240 = pneg %p239
      // Predicated region
      $region41: #{tpu_custom_call.1} parent=5 // pred_check
        _
      $region42: #{tpu_custom_call.1} parent=5 // pred_check_branch
        %242 = sbr.rel (%p239) target = $region44
      $region43: #{tpu_custom_call.1} parent=5 // pred_region
        %s243 = ssub.s32 %s16, 1
        // Predicated region
        $region45: #{tpu_custom_call.1} parent=43 // pred_check
          %p244 = pneg %p105
        $region46: #{tpu_custom_call.1} parent=43 // pred_check_branch
          %246 = sbr.rel (%p244) target = $region48
        $region47: #{tpu_custom_call.1} parent=43 // pred_region
          %247 = dma.done [#allocation3], 2048
        $region48: #{tpu_custom_call.1} parent=43 // pred_fallthru
          _
        %s248 = smul.u32 2, %s21
        %p249 = scmp.lt.s32.totalorder %s248, 3
        %s250 = scalar_select %p249, %s248, 3
        %s251 = smul.addr %s250, 8
        %s252 = scalar_lea.vmem %s0, %s251
        %p253 = pneg %p42
        %p254 = pneg %p39
        %p255 = pneg %p63
        %p256 = pneg %p60
        %p257 = pneg %p84
        %p258 = pneg %p81
        %p259 = pneg %p105
        %p260 = pneg %p102
        %p261 = pneg %p126
        %p262 = pneg %p123
        %s263 = smul.u32 2, %s21
        %p264 = scmp.lt.s32.totalorder %s263, 3
        %s265 = scalar_select %p264, %s263, 3
        %s266 = smul.addr %s265, 8
        %s267 = scalar_lea.vmem %s5, %s266
        %p268 = pneg %p152
        %p269 = pneg %p149
        %p270 = pneg %p178
        %p271 = pneg %p175
        %s272 = sand.u32 %s165, 1
        %s273 = scalar_lea.sflag [#allocation4], %s272
        %s274 = sand.u32 %s165, 1
        %s275 = smul.addr %s274, 48
        %s276 = scalar_lea.vmem [#allocation5], %s275
        %s277 = smul.u32 2, %s21
        %p278 = scmp.lt.s32.totalorder %s277, 3
        %s279 = scalar_select %p278, %s277, 3
        %s280 = smul.addr %s279, 8
        %s281 = scalar_lea.vmem %s0, %s280
        %s282 = smul.u32 2, %s21
        %s283 = smul.u32 2, %s21
        %p284 = scmp.lt.s32.totalorder %s283, 3
        %s285 = scalar_select %p284, %s283, 3
        %s286 = smul.addr %s285, 8
        %s287 = scalar_lea.vmem %s5, %s286
        %s288 = smul.u32 2, %s21
        %s289 = smul.u32 2, %s21
        %v291 = vld [vmem:[%s281] sm:$0xff]
        %v292 = vld [vmem:[%s281 + $0x8] sm:$0xff]
        %v293 = vpack.c.bf16 %v292, %v291
        %v294 = vld [vmem:[%s1] sm:$0xf]
        %v295 = vld [vmem:[%s1 + $0x4] sm:$0xf]
        %v296 = vld [vmem:[%s2] sm:$0x1]
        %v298 = vlaneseq
        %v299 = vshrl.u32 %v298, 7
        %v300 = vsub.s32 0, %v299
        %v301 = vrot.slane %v296, %v300
        %v305 = vunpack.c.l.b16 %v294
        %v306 = vunpack.c.l.b16 %v295
        %v307 = vpack.c.b16 %v306, %v305
        %vm309 = vcmask 130048
        %v311 = vsel %vm309, %v293, 0
        %313 = vmatprep.subr.bf16.mxu0 0
        %314 = vmatpush1.bf16.msra.mxu0 %v307
        %315 = vmatprep.subr.bf16.mxu0 0
        %316 = vmatpush1.bf16.msra.mxu0 0
        %317 = vmatprep.subr.bf16.mxu0 0
        %318 = vmatpush1.bf16.msra.mxu0 0
        %319 = vmatprep.subr.bf16.mxu0 0
        %320 = vmatpush1.bf16.msra.mxu0 0
        %321 = vmatprep.subr.bf16.mxu0 0
        %322 = vmatpush1.bf16.msra.mxu0 0
        %323 = vmatprep.subr.bf16.mxu0 0
        %324 = vmatpush1.bf16.msra.mxu0 0
        %325 = vmatprep.subr.bf16.mxu0 0
        %326 = vmatpush1.bf16.msra.mxu0 0
        %327 = vmatprep.subr.bf16.mxu0 0
        %328 = vmatpush1.bf16.msra.mxu0 0
        %329 = vmatprep.subr.bf16.mxu0 0
        %330 = vmatpush1.bf16.msra.mxu0 0
        %331 = vmatprep.subr.bf16.mxu0 0
        %332 = vmatpush1.bf16.msra.mxu0 0
        %333 = vmatprep.subr.bf16.mxu0 0
        %334 = vmatpush1.bf16.msra.mxu0 0
        %335 = vmatprep.subr.bf16.mxu0 0
        %336 = vmatpush1.bf16.msra.mxu0 0
        %337 = vmatprep.subr.bf16.mxu0 0
        %338 = vmatpush1.bf16.msra.mxu0 0
        %339 = vmatprep.subr.bf16.mxu0 0
        %340 = vmatpush1.bf16.msra.mxu0 0
        %341 = vmatprep.subr.bf16.mxu0 0
        %342 = vmatpush1.bf16.msra.mxu0 0
        %343 = vmatprep.subr.bf16.mxu0 0
        %344 = vmatpush1.bf16.msra.mxu0 0
        %345 = vmatprep.mubr.bf16.mxu0 0
        %346 = vmatmul.mubr.bf16.gmra.mrb[0].mxu0 %v311
        %v347 = vpop.f32.mrb[0].mxu0
        %v348 = vadd.f32 %v301, %v347
        %v349 = vpop.f32.mrb[0].mxu0
        %v350 = vpop.f32.mrb[0].mxu0
        %v351 = vadd.f32 %v301, %v350
        %v352 = vpop.f32.mrb[0].mxu0
        %353 = vdwg.mxu0
        %v354 = vmax.f32 %v348, 0.0
        %v355 = vmax.f32 %v351, 0.0
        %v356 = vpack.c.bf16 %v355, %v354
        %v357 = vld [vmem:[#allocation2] sm:$0xff]
        %v358 = vld [vmem:[#allocation2 + $0x8] sm:$0xff]
        %v359 = vld [vmem:[#allocation2 + $0x10] sm:$0xff]
        %v360 = vld [vmem:[#allocation2 + $0x18] sm:$0xff]
        %v361 = vld [vmem:[#allocation2 + $0x20] sm:$0xff]
        %v362 = vld [vmem:[#allocation2 + $0x28] sm:$0xff]
        %v363 = vld [vmem:[#allocation2 + $0x30] sm:$0xff]
        %v364 = vld [vmem:[#allocation2 + $0x38] sm:$0xff]
        %v365 = vld [vmem:[#allocation2 + $0x40] sm:$0xff]
        %v366 = vld [vmem:[#allocation2 + $0x48] sm:$0xff]
        %v367 = vld [vmem:[#allocation2 + $0x50] sm:$0xff]
        %v368 = vld [vmem:[#allocation2 + $0x58] sm:$0xff]
        %v369 = vld [vmem:[#allocation2 + $0x60] sm:$0xff]
        %v370 = vld [vmem:[#allocation2 + $0x68] sm:$0xff]
        %v371 = vld [vmem:[#allocation2 + $0x70] sm:$0xff]
        %v372 = vld [vmem:[#allocation2 + $0x78] sm:$0xff]
        %v373 = vld [vmem:[%s4] sm:$0x3]
        %v375 = vlaneseq
        %v376 = vshrl.u32 %v375, 7
        %v377 = vsub.s32 0, %v376
        %v378 = vrot.slane %v373, %v377
        %v379 = vlaneseq
        %v380 = vshrl.u32 %v379, 7
        %v381 = vsub.s32 1, %v380
        %v382 = vrot.slane %v373, %v381
        %v401 = vunpack.c.l.b16 %v357
        %v402 = vunpack.c.h.b16 %v357
        %v403 = vunpack.c.l.b16 %v358
        %v404 = vunpack.c.h.b16 %v358
        %v405 = vunpack.c.l.b16 %v359
        %v406 = vunpack.c.h.b16 %v359
        %v407 = vunpack.c.l.b16 %v360
        %v408 = vunpack.c.h.b16 %v360
        %v409 = vunpack.c.l.b16 %v361
        %v410 = vunpack.c.h.b16 %v361
        %v411 = vunpack.c.l.b16 %v362
        %v412 = vunpack.c.h.b16 %v362
        %v413 = vunpack.c.l.b16 %v363
        %v414 = vunpack.c.h.b16 %v363
        %v415 = vunpack.c.l.b16 %v364
        %v416 = vunpack.c.h.b16 %v364
        %v417 = vunpack.c.l.b16 %v365
        %v418 = vunpack.c.h.b16 %v365
        %v419 = vunpack.c.l.b16 %v366
        %v420 = vunpack.c.h.b16 %v366
        %v421 = vunpack.c.l.b16 %v367
        %v422 = vunpack.c.h.b16 %v367
        %v423 = vunpack.c.l.b16 %v368
        %v424 = vunpack.c.h.b16 %v368
        %v425 = vunpack.c.l.b16 %v369
        %v426 = vunpack.c.h.b16 %v369
        %v427 = vunpack.c.l.b16 %v370
        %v428 = vunpack.c.h.b16 %v370
        %v429 = vunpack.c.l.b16 %v371
        %v430 = vunpack.c.h.b16 %v371
        %v431 = vunpack.c.l.b16 %v372
        %v432 = vunpack.c.h.b16 %v372
        %v433 = vpack.c.b16 %v403, %v401
        %v434 = vpack.c.b16 %v404, %v402
        %v435 = vpack.c.b16 %v407, %v405
        %v436 = vpack.c.b16 %v408, %v406
        %v437 = vpack.c.b16 %v411, %v409
        %v438 = vpack.c.b16 %v412, %v410
        %v439 = vpack.c.b16 %v415, %v413
        %v440 = vpack.c.b16 %v416, %v414
        %v441 = vpack.c.b16 %v419, %v417
        %v442 = vpack.c.b16 %v420, %v418
        %v443 = vpack.c.b16 %v423, %v421
        %v444 = vpack.c.b16 %v424, %v422
        %v445 = vpack.c.b16 %v427, %v425
        %v446 = vpack.c.b16 %v428, %v426
        %v447 = vpack.c.b16 %v431, %v429
        %v448 = vpack.c.b16 %v432, %v430
        %465 = vmatprep.subr.bf16.mxu0 %v434
        %466 = vmatpush1.bf16.msra.mxu0 %v433
        %467 = vmatprep.subr.bf16.mxu0 %v436
        %468 = vmatpush1.bf16.msra.mxu0 %v435
        %469 = vmatprep.subr.bf16.mxu0 %v438
        %470 = vmatpush1.bf16.msra.mxu0 %v437
        %471 = vmatprep.subr.bf16.mxu0 %v440
        %472 = vmatpush1.bf16.msra.mxu0 %v439
        %473 = vmatprep.subr.bf16.mxu0 %v442
        %474 = vmatpush1.bf16.msra.mxu0 %v441
        %475 = vmatprep.subr.bf16.mxu0 %v444
        %476 = vmatpush1.bf16.msra.mxu0 %v443
        %477 = vmatprep.subr.bf16.mxu0 %v446
        %478 = vmatpush1.bf16.msra.mxu0 %v445
        %479 = vmatprep.subr.bf16.mxu0 %v448
        %480 = vmatpush1.bf16.msra.mxu0 %v447
        %481 = vmatprep.subr.bf16.mxu0 0
        %482 = vmatpush1.bf16.msra.mxu0 0
        %483 = vmatprep.subr.bf16.mxu0 0
        %484 = vmatpush1.bf16.msra.mxu0 0
        %485 = vmatprep.subr.bf16.mxu0 0
        %486 = vmatpush1.bf16.msra.mxu0 0
        %487 = vmatprep.subr.bf16.mxu0 0
        %488 = vmatpush1.bf16.msra.mxu0 0
        %489 = vmatprep.subr.bf16.mxu0 0
        %490 = vmatpush1.bf16.msra.mxu0 0
        %491 = vmatprep.subr.bf16.mxu0 0
        %492 = vmatpush1.bf16.msra.mxu0 0
        %493 = vmatprep.subr.bf16.mxu0 0
        %494 = vmatpush1.bf16.msra.mxu0 0
        %495 = vmatprep.subr.bf16.mxu0 0
        %496 = vmatpush1.bf16.msra.mxu0 0
        %497 = vmatprep.mubr.bf16.mxu0 0
        %498 = vmatmul.mubr.bf16.gmra.mrb[0].mxu0 %v356
        %v499 = vpop.f32.mrb[0].mxu0
        %v500 = vadd.f32 %v378, %v499
        %v501 = vpop.f32.mrb[0].mxu0
        %v502 = vadd.f32 %v382, %v501
        %v503 = vpop.f32.mrb[0].mxu0
        %v504 = vadd.f32 %v378, %v503
        %v505 = vpop.f32.mrb[0].mxu0
        %v506 = vadd.f32 %v382, %v505
        %507 = vdwg.mxu0
        %v508 = vmul.f32 %v502, 0.5
        %v509 = vmul.f32 %v506, 0.5
        %v510 = vmul.f32 %v508, 1.442695
        %v511 = vpow.pop %v510
        %v512 = vmul.f32 %v509, 1.442695
        %v513 = vpow.pop %v512
        %v514 = vld [vmem:[%s287] sm:$0xff]
        %v515 = vld [vmem:[%s287 + $0x8] sm:$0xff]
        %v516 = vmul.f32 %v511, %v514
        %v517 = vmul.f32 %v513, %v515
        %v518 = vadd.f32 %v500, %v516
        %v519 = vadd.f32 %v504, %v517
        %520 = vst [vmem:[%s276] sm:$0xff] %v518
        %521 = vst [vmem:[%s276 + $0x18] sm:$0xff] %v519
        %522 = vst [vmem:[%s276 + $0x8] sm:$0xff] %v500
        %523 = vst [vmem:[%s276 + $0x10] sm:$0xff] %v502
        %524 = vst [vmem:[%s276 + $0x20] sm:$0xff] %v504
        %525 = vst [vmem:[%s276 + $0x28] sm:$0xff] %v506
        %s526 = sand.u32 %s165, 1
        %s527 = scalar_lea.sflag [#allocation4], %s526
        %s528 = sand.u32 %s165, 1
        %s529 = smul.addr %s528, 48
        %s530 = scalar_lea.vmem [#allocation5], %s529
        // Predicated region
        $region49: #{tpu_custom_call.1} parent=43 // pred_check
          %p531 = pneg %p175
        $region50: #{tpu_custom_call.1} parent=43 // pred_check_branch
          %533 = sbr.rel (%p531) target = $region52
        $region51: #{tpu_custom_call.1} parent=43 // pred_region
          %s534 = smul.u32 2, %s21
          %s536 = ssub.s32 768, 768
          %537 = vsyncadd %s527, %s536
          %s538 = smul.addr %s534, 3
          %s539 = smul.addr %s538, 128
          %s540 = scalar_lea.hbm %s6, %s539
          %s541 = sshll.u32 %s530, 4
          %s542 = int_to_ptr.vmem [resolvable:$true] %s541
          %547 = dma.vmem_to_hbm [thread:$0]  %s542, 768, %s540, %s527, 384, 384, 24
        $region52: #{tpu_custom_call.1} parent=43 // pred_fallthru
          _
      $region44: #{tpu_custom_call.1} parent=5 // pred_fallthru
        _
      %p548 = scmp.le.s32.totalorder 2, %s16
      // Predicated region
      $region53: #{tpu_custom_call.1} parent=5 // pred_check
        %p549 = pneg %p548
      $region54: #{tpu_custom_call.1} parent=5 // pred_check_branch
        %551 = sbr.rel (%p549) target = $region56
      $region55: #{tpu_custom_call.1} parent=5 // pred_region
        %s552 = ssub.s32 %s16, 2
        // Predicated region
        $region57: #{tpu_custom_call.1} parent=55 // pred_check
          %p553 = pneg %p181
        $region58: #{tpu_custom_call.1} parent=55 // pred_check_branch
          %555 = sbr.rel (%p553) target = $region60
        $region59: #{tpu_custom_call.1} parent=55 // pred_region
          %s556 = sand.u32 %s166, 1
          %s557 = scalar_lea.sflag [#allocation4], %s556
          %s558 = sand.u32 %s166, 1
          %s559 = smul.addr %s558, 48
          %s560 = scalar_lea.vmem [#allocation5], %s559
          %561 = dma.done %s557, 768
        $region60: #{tpu_custom_call.1} parent=55 // pred_fallthru
          _
      $region56: #{tpu_custom_call.1} parent=5 // pred_fallthru
        _
    $region6: #{tpu_custom_call.1} parent=1 // loop_footer
      %s20 = sadd.s32 1, %s16
    $region7: #{tpu_custom_call.1} parent=1 // loop_footer_branch
      %15 = sbr.rel target = $region3
    $region8: #{tpu_custom_call.1} parent=1 // loop_exit
      _
    %562 = vsyncpa [#allocation3], 1
    %s563 = scalar_lea.sflag [#allocation3], 1
    %564 = vsyncpa %s563, 1
    %565 = vsyncpa [#allocation4], 1
    %s566 = scalar_lea.sflag [#allocation4], 1
    %567 = vsyncpa %s566, 1

</llo_original>
